<compile_context>
chip_gen: v5e
topology: v5e:2x2
jax: 0.10.0
libtpu: 0.0.40
codegen_flags: <defaults>
</compile_context>

<pallas_src>
import jax
import jax.numpy as jnp
from jax.experimental import pallas as pl
from jax.experimental.pallas import tpu as pltpu

# ---------------- configuration --------------------------------------------
BATCH = 2
INPUT_SIZE = 16
HIDDEN_SIZE = 32
OUTPUT_SIZE = 8

VMEM_SPEC = pl.BlockSpec(memory_space=pltpu.MemorySpace.VMEM)


# ---------------- fused MLP kernel ------------------------------------------
def mlp_kernel(x_ref, w1_ref, b1_ref, w2_ref, b2_ref, w3_ref, b3_ref, o_ref):
    # fc1 + ReLU
    h = jnp.dot(x_ref[...], w1_ref[...], preferred_element_type=jnp.float32)
    h = jnp.maximum(h + b1_ref[...], 0.0)
    # fc2 + ReLU
    h = jnp.dot(h, w2_ref[...], preferred_element_type=jnp.float32)
    h = jnp.maximum(h + b2_ref[...], 0.0)
    # fc3 (no activation)
    o = jnp.dot(h, w3_ref[...], preferred_element_type=jnp.float32) + b3_ref[...]
    o_ref[...] = o.astype(o_ref.dtype)


# ---------------- one-time parameter preparation -----------------------------
def prepare_params(params, dtype=jnp.float32):
    """Transpose PyTorch-layout weights to (in, out) and reshape biases to
    (1, out) once, outside the per-call path.  Optionally cast to bf16 for
    v6e/v7x (keep f32 for bit-parity with the reference)."""
    return {
        "w1": jnp.asarray(params["w1"], dtype).T,
        "b1": jnp.asarray(params["b1"], dtype).reshape(1, -1),
        "w2": jnp.asarray(params["w2"], dtype).T,
        "b2": jnp.asarray(params["b2"], dtype).reshape(1, -1),
        "w3": jnp.asarray(params["w3"], dtype).T,
        "b3": jnp.asarray(params["b3"], dtype).reshape(1, -1),
    }


# ---------------- wrapper ----------------------------------------------------
def mlp_forward(prepared, x):
    """prepared: output of prepare_params.  x: (B, input_size)."""
    B = x.shape[0]
    out_dim = prepared["w3"].shape[1]

    # Single fused call.  Full-array BlockSpecs (block == array shape) mean
    # Mosaic handles the (8,128) tile padding internally -- no wrapper pads,
    # no output slice.
    return pl.pallas_call(
        mlp_kernel,
        out_shape=jax.ShapeDtypeStruct((B, out_dim), jnp.float32),
        in_specs=[VMEM_SPEC] * 7,
        out_specs=VMEM_SPEC,
    )(
        x,
        prepared["w1"], prepared["b1"],
        prepared["w2"], prepared["b2"],
        prepared["w3"], prepared["b3"],
    )


# ---------------- deterministic parameter init -------------------------------
def init_params(key):
    def unif(k, shape, fan_in):
        bound = 1.0 / float(fan_in) ** 0.5
        return jax.random.uniform(k, shape, jnp.float32, -bound, bound)

    k1, k2, k3, k4, k5, k6 = jax.random.split(key, 6)
    return {
        "w1": unif(k1, (HIDDEN_SIZE, INPUT_SIZE), INPUT_SIZE),
        "b1": unif(k2, (HIDDEN_SIZE,), INPUT_SIZE),
        "w2": unif(k3, (HIDDEN_SIZE, HIDDEN_SIZE), HIDDEN_SIZE),
        "b2": unif(k4, (HIDDEN_SIZE,), HIDDEN_SIZE),
        "w3": unif(k5, (OUTPUT_SIZE, HIDDEN_SIZE), HIDDEN_SIZE),
        "b3": unif(k6, (OUTPUT_SIZE,), HIDDEN_SIZE),
    }


# ---------------- pure-JAX reference (PyTorch semantics) ---------------------
def mlp_reference(params, x):
    h = jnp.maximum(x @ params["w1"].T + params["b1"], 0.0)
    h = jnp.maximum(h @ params["w2"].T + params["b2"], 0.0)
    return h @ params["w3"].T + params["b3"]


if __name__ == "__main__":
    key = jax.random.PRNGKey(0)
    kp, kx = jax.random.split(key, 2)
    params = init_params(kp)
    x = jax.random.normal(kx, (BATCH, INPUT_SIZE), jnp.float32)

    # One-time prep (off the per-call critical path).
    prepared = jax.tree_util.tree_map(jax.block_until_ready, prepare_params(params))

    fwd = jax.jit(mlp_forward)
    out = fwd(prepared, x)
    jax.block_until_ready(out)

    ref = mlp_reference(params, x)
    assert out.shape == (BATCH, OUTPUT_SIZE), out.shape
    assert bool(jnp.all(jnp.isfinite(out)))
    assert bool(jnp.allclose(out, ref, rtol=1e-5, atol=1e-5)), (
        float(jnp.max(jnp.abs(out - ref))))
    print("KERNEL_OK")
</pallas_src>

<mosaic_0001>
module attributes {stable_mosaic.version = 11 : i64} {
  func.func @mlp_kernel(%arg0: memref<2x16xf32, #tpu.memory_space<vmem>>, %arg1: memref<16x32xf32, #tpu.memory_space<vmem>>, %arg2: memref<1x32xf32, #tpu.memory_space<vmem>>, %arg3: memref<32x32xf32, #tpu.memory_space<vmem>>, %arg4: memref<1x32xf32, #tpu.memory_space<vmem>>, %arg5: memref<32x8xf32, #tpu.memory_space<vmem>>, %arg6: memref<1x8xf32, #tpu.memory_space<vmem>>, %arg7: memref<2x8xf32, #tpu.memory_space<vmem>>) attributes {dimension_semantics = [], scalar_prefetch = 0 : i64, scratch_operands = 0 : i64, tpu.core_type = #tpu.core_type<tc>} {
    %c0 = arith.constant 0 : index
    %c0_0 = arith.constant 0 : index
    %0 = vector.load %arg0[%c0, %c0_0] : memref<2x16xf32, #tpu.memory_space<vmem>>, vector<2x16xf32>
    %c0_1 = arith.constant 0 : index
    %c0_2 = arith.constant 0 : index
    %1 = vector.load %arg1[%c0_1, %c0_2] : memref<16x32xf32, #tpu.memory_space<vmem>>, vector<16x32xf32>
    %cst = arith.constant dense<0.000000e+00> : vector<2x32xf32>
    %2 = tpu.matmul %0, %1, %cst {dimension_numbers = #tpu.dot_dimension_numbers<[1], [0], [0], [1], [0, 0, 1, 1], [], []>} : vector<2x16xf32>, vector<16x32xf32>, vector<2x32xf32> -> vector<2x32xf32>
    %c0_3 = arith.constant 0 : index
    %c0_4 = arith.constant 0 : index
    %3 = vector.load %arg2[%c0_3, %c0_4] : memref<1x32xf32, #tpu.memory_space<vmem>>, vector<1x32xf32>
    %4 = vector.broadcast %3 : vector<1x32xf32> to vector<2x32xf32>
    %5 = arith.addf %2, %4 : vector<2x32xf32>
    %cst_5 = arith.constant 0.000000e+00 : f32
    %6 = vector.broadcast %cst_5 : f32 to vector<2x32xf32>
    %7 = arith.maximumf %5, %6 : vector<2x32xf32>
    %c0_6 = arith.constant 0 : index
    %c0_7 = arith.constant 0 : index
    %8 = vector.load %arg3[%c0_6, %c0_7] : memref<32x32xf32, #tpu.memory_space<vmem>>, vector<32x32xf32>
    %cst_8 = arith.constant dense<0.000000e+00> : vector<2x32xf32>
    %9 = tpu.matmul %7, %8, %cst_8 {dimension_numbers = #tpu.dot_dimension_numbers<[1], [0], [0], [1], [0, 0, 1, 1], [], []>} : vector<2x32xf32>, vector<32x32xf32>, vector<2x32xf32> -> vector<2x32xf32>
    %c0_9 = arith.constant 0 : index
    %c0_10 = arith.constant 0 : index
    %10 = vector.load %arg4[%c0_9, %c0_10] : memref<1x32xf32, #tpu.memory_space<vmem>>, vector<1x32xf32>
    %11 = vector.broadcast %10 : vector<1x32xf32> to vector<2x32xf32>
    %12 = arith.addf %9, %11 : vector<2x32xf32>
    %cst_11 = arith.constant 0.000000e+00 : f32
    %13 = vector.broadcast %cst_11 : f32 to vector<2x32xf32>
    %14 = arith.maximumf %12, %13 : vector<2x32xf32>
    %c0_12 = arith.constant 0 : index
    %c0_13 = arith.constant 0 : index
    %15 = vector.load %arg5[%c0_12, %c0_13] : memref<32x8xf32, #tpu.memory_space<vmem>>, vector<32x8xf32>
    %cst_14 = arith.constant dense<0.000000e+00> : vector<2x8xf32>
    %16 = tpu.matmul %14, %15, %cst_14 {dimension_numbers = #tpu.dot_dimension_numbers<[1], [0], [0], [1], [0, 0, 1, 1], [], []>} : vector<2x32xf32>, vector<32x8xf32>, vector<2x8xf32> -> vector<2x8xf32>
    %c0_15 = arith.constant 0 : index
    %c0_16 = arith.constant 0 : index
    %17 = vector.load %arg6[%c0_15, %c0_16] : memref<1x8xf32, #tpu.memory_space<vmem>>, vector<1x8xf32>
    %18 = vector.broadcast %17 : vector<1x8xf32> to vector<2x8xf32>
    %19 = arith.addf %16, %18 : vector<2x8xf32>
    %c0_17 = arith.constant 0 : index
    %c0_18 = arith.constant 0 : index
    %20 = vector.load %arg7[%c0_17, %c0_18] : memref<2x8xf32, #tpu.memory_space<vmem>>, vector<2x8xf32>
    tpu.vector_store %arg7[%c0_17, %c0_18], %19 {strides = array<i32>} : memref<2x8xf32, #tpu.memory_space<vmem>>, vector<2x8xf32>,
    return
  }
}

</mosaic_0001>

<llo_original>
// kernel: mlp_forward.1
$region0: #{mlp_forward.1}
  #allocation0 [shape = 'u32[]', space=smem, size = 0x4, offset = 0x4, fixed_abs, tag = 'smem constant byte address 0x4 - core index']
  #allocation1 [shape = 'u32[72,128]{1,0:T(1,128)}', space=vmem, size = 0x9000, scoped, tag = 'internal scratch']
  %s0 = inlined_call_operand.vmem [shape: f32[2,16], index: 0, kind: input, shape index: {}]
  %s1 = inlined_call_operand.hbm [shape: f32[16,32], index: 1, kind: input, shape index: {}]
  %s2 = inlined_call_operand.vmem [shape: f32[1,32], index: 2, kind: input, shape index: {}]
  %s3 = inlined_call_operand.vmem [shape: f32[32,32], index: 3, kind: input, shape index: {}]
  %s4 = inlined_call_operand.vmem [shape: f32[1,32], index: 4, kind: input, shape index: {}]
  %s5 = inlined_call_operand.vmem [shape: f32[32,8], index: 5, kind: input, shape index: {}]
  %s6 = inlined_call_operand.vmem [shape: f32[1,8], index: 6, kind: input, shape index: {}]
  %s7 = inlined_call_operand.hbm [shape: f32[2,8], index: 7, kind: output, shape index: {}]
  %s8 = sld [smem:[#allocation0]]
  $region42: #{mlp_forward.1} parent=0
    _
  %s10 = ssub.s32 1, %s8
  %s11 = scalar_select 0, %s10, %s8
  $region1: #{mlp_forward.1} parent=0
    #allocation2 [shape = 'u8[8192]{0}', space=vmem, size = 0x2000, scoped, tag = 'input window, operand 1, single buffered']
    #allocation3 [shape = 's32[1]{0}', space=sflag, size = 0x4, scoped, tag = 'scoped memory for mlp_forward.1']
    #allocation4 [shape = 's32[1]{0}', space=sflag, size = 0x4, scoped, tag = 'scoped memory for mlp_forward.1']
    #allocation5 [shape = 'u8[1024]{0}', space=vmem, size = 0x400, scoped, tag = 'output window, operand 0, single buffered']
    %12 = vsyncpa [#allocation3], 0
    %13 = vsyncpa [#allocation4], 0
    // Predicated region
    $region2: #{mlp_forward.1} parent=1 // pred_check
      _
    $region3: #{mlp_forward.1} parent=1 // pred_check_branch
      %15 = sbr.rel (0) target = $region5
    $region4: #{mlp_forward.1} parent=1 // pred_region
      _
    $region5: #{mlp_forward.1} parent=1 // pred_fallthru
      _
    // Predicated region
    $region6: #{mlp_forward.1} parent=1 // pred_check
      _
    $region7: #{mlp_forward.1} parent=1 // pred_check_branch
      %17 = sbr.rel (0) target = $region9
    $region8: #{mlp_forward.1} parent=1 // pred_region
      %19 = vsyncadd [#allocation3], 0
      %s20 = sshll.u32 %s1, 4
      %s21 = int_to_ptr.hbm [resolvable:$true] %s20
      %s22 = sshll.u32 [#allocation2], 4
      %s23 = int_to_ptr.vmem [resolvable:$true] %s22
      %28 = dma.hbm_to_vmem [thread:$0]  %s21, 256, %s23, [#allocation3], 128, 128, 8
    $region9: #{mlp_forward.1} parent=1 // pred_fallthru
      _
    // Predicated region
    $region10: #{mlp_forward.1} parent=1 // pred_check
      _
    $region11: #{mlp_forward.1} parent=1 // pred_check_branch
      %30 = sbr.rel (0) target = $region13
    $region12: #{mlp_forward.1} parent=1 // pred_region
      _
    $region13: #{mlp_forward.1} parent=1 // pred_fallthru
      _
    // Predicated region
    $region14: #{mlp_forward.1} parent=1 // pred_check
      _
    $region15: #{mlp_forward.1} parent=1 // pred_check_branch
      %32 = sbr.rel (0) target = $region17
    $region16: #{mlp_forward.1} parent=1 // pred_region
      _
    $region17: #{mlp_forward.1} parent=1 // pred_fallthru
      _
    // Predicated region
    $region18: #{mlp_forward.1} parent=1 // pred_check
      _
    $region19: #{mlp_forward.1} parent=1 // pred_check_branch
      %34 = sbr.rel (0) target = $region21
    $region20: #{mlp_forward.1} parent=1 // pred_region
      _
    $region21: #{mlp_forward.1} parent=1 // pred_fallthru
      _
    // Predicated region
    $region22: #{mlp_forward.1} parent=1 // pred_check
      _
    $region23: #{mlp_forward.1} parent=1 // pred_check_branch
      %36 = sbr.rel (0) target = $region25
    $region24: #{mlp_forward.1} parent=1 // pred_region
      _
    $region25: #{mlp_forward.1} parent=1 // pred_fallthru
      _
    // Predicated region
    $region26: #{mlp_forward.1} parent=1 // pred_check
      _
    $region27: #{mlp_forward.1} parent=1 // pred_check_branch
      %38 = sbr.rel (0) target = $region29
    $region28: #{mlp_forward.1} parent=1 // pred_region
      _
    $region29: #{mlp_forward.1} parent=1 // pred_fallthru
      _
    // Predicated region
    $region30: #{mlp_forward.1} parent=1 // pred_check
      _
    $region31: #{mlp_forward.1} parent=1 // pred_check_branch
      %40 = sbr.rel (0) target = $region33
    $region32: #{mlp_forward.1} parent=1 // pred_region
      %42 = dma.done [#allocation3], 256
    $region33: #{mlp_forward.1} parent=1 // pred_fallthru
      _
    %v43 = vld [vmem:[%s0] sm:$0x3]
    %v44 = vld [vmem:[#allocation2] sm:$0xff]
    %v45 = vld [vmem:[#allocation2 + $0x8] sm:$0xff]
    %v46 = vld [vmem:[%s2] sm:$0x1]
    %v48 = vperm.slane %v46, 0
    %vm50 = vcmask 130048
    %v52 = vsel %vm50, %v43, 0
    %54 = vmatpush.msra.mxu0 0.0
    %55 = vmatpush.msra.mxu0 0.0
    %56 = vmatpush.msra.mxu0 0.0
    %57 = vmatpush.msra.mxu0 0.0
    %58 = vmatpush.msra.mxu0 0.0
    %59 = vmatpush.msra.mxu0 0.0
    %60 = vmatpush.msra.mxu0 0.0
    %61 = vmatpush.msra.mxu0 0.0
    %62 = vmatpush.msra.mxu0 0.0
    %63 = vmatpush.msra.mxu0 0.0
    %64 = vmatpush.msra.mxu0 0.0
    %65 = vmatpush.msra.mxu0 0.0
    %66 = vmatpush.msra.mxu0 0.0
    %67 = vmatpush.msra.mxu0 0.0
    %68 = vmatpush.msra.mxu0 %v45
    %69 = vmatpush.msra.mxu0 %v44
    %70 = vmatmul.f32.gmra.mxu0 %v52
    %v71 = vpop.f32.mrf.mxu0
    %v72 = vadd.f32 %v48, %v71
    %73 = vdwg.mxu0
    %v74 = vmax.f32 %v72, 0.0
    %v75 = vld [vmem:[%s3] sm:$0xff]
    %v76 = vld [vmem:[%s3 + $0x8] sm:$0xff]
    %v77 = vld [vmem:[%s3 + $0x10] sm:$0xff]
    %v78 = vld [vmem:[%s3 + $0x18] sm:$0xff]
    %v79 = vld [vmem:[%s4] sm:$0x1]
    %v81 = vperm.slane %v79, 0
    %vm83 = vcmask 261120
    %v85 = vsel %vm83, %v74, 0
    %87 = vmatpush.msra.mxu0 0.0
    %88 = vmatpush.msra.mxu0 0.0
    %89 = vmatpush.msra.mxu0 0.0
    %90 = vmatpush.msra.mxu0 0.0
    %91 = vmatpush.msra.mxu0 0.0
    %92 = vmatpush.msra.mxu0 0.0
    %93 = vmatpush.msra.mxu0 0.0
    %94 = vmatpush.msra.mxu0 0.0
    %95 = vmatpush.msra.mxu0 0.0
    %96 = vmatpush.msra.mxu0 0.0
    %97 = vmatpush.msra.mxu0 0.0
    %98 = vmatpush.msra.mxu0 0.0
    %99 = vmatpush.msra.mxu0 %v78
    %100 = vmatpush.msra.mxu0 %v77
    %101 = vmatpush.msra.mxu0 %v76
    %102 = vmatpush.msra.mxu0 %v75
    %103 = vmatmul.f32.gmra.mxu0 %v85
    %v104 = vpop.f32.mrf.mxu0
    %v105 = vadd.f32 %v81, %v104
    %106 = vdwg.mxu0
    %v107 = vmax.f32 %v105, 0.0
    %v108 = vld [vmem:[%s5] sm:$0xff]
    %v109 = vld [vmem:[%s5 + $0x8] sm:$0xff]
    %v110 = vld [vmem:[%s5 + $0x10] sm:$0xff]
    %v111 = vld [vmem:[%s5 + $0x18] sm:$0xff]
    %v112 = vld [vmem:[%s6] sm:$0x1]
    %v114 = vperm.slane %v112, 0
    %v117 = vsel %vm83, %v107, 0
    %119 = vmatpush.msra.mxu0 0.0
    %120 = vmatpush.msra.mxu0 0.0
    %121 = vmatpush.msra.mxu0 0.0
    %122 = vmatpush.msra.mxu0 0.0
    %123 = vmatpush.msra.mxu0 0.0
    %124 = vmatpush.msra.mxu0 0.0
    %125 = vmatpush.msra.mxu0 0.0
    %126 = vmatpush.msra.mxu0 0.0
    %127 = vmatpush.msra.mxu0 0.0
    %128 = vmatpush.msra.mxu0 0.0
    %129 = vmatpush.msra.mxu0 0.0
    %130 = vmatpush.msra.mxu0 0.0
    %131 = vmatpush.msra.mxu0 %v111
    %132 = vmatpush.msra.mxu0 %v110
    %133 = vmatpush.msra.mxu0 %v109
    %134 = vmatpush.msra.mxu0 %v108
    %135 = vmatmul.f32.gmra.mxu0 %v117
    %v136 = vpop.f32.mrf.mxu0
    %v137 = vadd.f32 %v114, %v136
    %138 = vdwg.mxu0
    %vm139 = vcmask 58368
    %140 = vst.msk [vmem:[#allocation5] sm:$0x3] %vm139, %v137
    // Predicated region
    $region34: #{mlp_forward.1} parent=1 // pred_check
      _
    $region35: #{mlp_forward.1} parent=1 // pred_check_branch
      %142 = sbr.rel (0) target = $region37
    $region36: #{mlp_forward.1} parent=1 // pred_region
      %144 = vsyncadd [#allocation4], 0
      %s146 = sshll.u32 [#allocation5], 4
      %s147 = int_to_ptr.vmem [resolvable:$true] %s146
      %s148 = sshll.u32 %s7, 4
      %s149 = int_to_ptr.hbm [resolvable:$true] %s148
      %151 = dma.vmem_to_hbm [thread:$0]  %s147, 32, %s149, [#allocation4]
    $region37: #{mlp_forward.1} parent=1 // pred_fallthru
      _
    // Predicated region
    $region38: #{mlp_forward.1} parent=1 // pred_check
      _
    $region39: #{mlp_forward.1} parent=1 // pred_check_branch
      %153 = sbr.rel (0) target = $region41
    $region40: #{mlp_forward.1} parent=1 // pred_region
      %155 = dma.done [#allocation4], 32
    $region41: #{mlp_forward.1} parent=1 // pred_fallthru
      _
    %156 = vsyncpa [#allocation3], 1
    %157 = vsyncpa [#allocation4], 1

</llo_original>
